<compile_context>
chip_gen: v6e
topology: v6e:2x2x1
jax: 0.10.0
libtpu: 0.0.40
codegen_flags: <defaults>
</compile_context>

<pallas_src>
import functools

import jax
import jax.numpy as jnp
from jax.experimental import pallas as pl
from jax.experimental.pallas import tpu as pltpu

LANE = 128
SUBLANE = 8


# ---------------------------------------------------------------------------
# Glue: trilinear upsample (scale=2, align_corners=True) on the small
# prediction map, matches nn.Upsample(scale_factor=2, mode='trilinear',
# align_corners=True).
# ---------------------------------------------------------------------------
def upsample_trilinear_align_corners(x, scale=2):
    def interp(arr, axis, out_size):
        in_size = arr.shape[axis]
        if out_size == in_size:
            return arr
        if in_size == 1:
            reps = [1] * arr.ndim
            reps[axis] = out_size
            return jnp.tile(arr, reps)
        coords = jnp.arange(out_size, dtype=jnp.float32) * (in_size - 1) / (out_size - 1)
        i0 = jnp.clip(jnp.floor(coords).astype(jnp.int32), 0, in_size - 1)
        i1 = jnp.minimum(i0 + 1, in_size - 1)
        t = (coords - i0.astype(jnp.float32)).astype(arr.dtype)
        a0 = jnp.take(arr, i0, axis=axis)
        a1 = jnp.take(arr, i1, axis=axis)
        shp = [1] * arr.ndim
        shp[axis] = out_size
        t = t.reshape(shp)
        return a0 * (1.0 - t) + a1 * t

    _, _, d, h, w = x.shape
    x = interp(x, 2, d * scale)
    x = interp(x, 3, h * scale)
    x = interp(x, 4, w * scale)
    return x


# ---------------------------------------------------------------------------
# Kernel 1: masked global-average-pool, accumulated across S tiles.
#   inputs : ct/pet (1,C1,TR,128), f_hi (1,C2,TR,128), mask (1,CM,TR,128)
#   outputs: pooled_fore / pooled_back blocks (1, Ctot, 1, 1), VMEM-resident
#            across the S-tile (reduction) grid axis.
#   channel layout of the pooled vectors = [ct (C1) | pet (C1) | f_hi (C2)]
# ---------------------------------------------------------------------------
def pool_kernel(ct_ref, pet_ref, fh_ref, mk_ref, outf_ref, outb_ref,
                *, C1, C2, CM, inv_S):
    t = pl.program_id(1)

    @pl.when(t == 0)
    def _init():
        outf_ref[...] = jnp.zeros_like(outf_ref)
        outb_ref[...] = jnp.zeros_like(outb_ref)

    ct = ct_ref[...].astype(jnp.float32)              # (1, C1, TR, 128)
    pet = pet_ref[...].astype(jnp.float32)            # (1, C1, TR, 128)
    fh = fh_ref[...].astype(jnp.float32)              # (1, C2, TR, 128)
    fg = mk_ref[:, 0:1, :, :].astype(jnp.float32)     # (1, 1, TR, 128)
    if CM == 1:                                       # n_classes == 2: bg = 1 - fg
        bg = 1.0 - fg
    else:
        bg = mk_ref[:, 1:2, :, :].astype(jnp.float32)

    def _sum23(x):                                    # (1, C, TR, 128) -> (1, C, 1, 1)
        x = jnp.sum(x, axis=3, keepdims=True)
        return jnp.sum(x, axis=2, keepdims=True)

    fh_sum = _sum23(fh)
    outf_ref[:, 0:C1, :, :] += _sum23(ct * fg)
    outf_ref[:, C1:2 * C1, :, :] += _sum23(pet * fg)
    outf_ref[:, 2 * C1:, :, :] += fh_sum
    outb_ref[:, 0:C1, :, :] += _sum23(ct * bg)
    outb_ref[:, C1:2 * C1, :, :] += _sum23(pet * bg)
    outb_ref[:, 2 * C1:, :, :] += fh_sum

    @pl.when(t == pl.num_programs(1) - 1)
    def _finalize():
        outf_ref[...] = outf_ref[...] * inv_S
        outb_ref[...] = outb_ref[...] * inv_S


# ---------------------------------------------------------------------------
# Kernel 2: fused elementwise enhancement.
#   f_enhance = concat(ct, pet, f_hi) + concat(f_fore) - concat(f_back)
# collapses, with per-channel weights wf / wb and per-voxel fg / bg, to:
#   ct  -> ct  * (1 + fg*wf_ct  - bg*wb_ct)
#   pet -> pet * (1 + fg*wf_pet - bg*wb_pet)
#   fhi -> fhi * (1 + wf_fhi    - wb_fhi)
# Each per-channel store targets a dense (TR, 128) slab -> unmasked vst.
# ---------------------------------------------------------------------------
def enhance_kernel(wf_ref, wb_ref, ct_ref, pet_ref, fh_ref, mk_ref, out_ref,
                   *, C1, C2, CM):
    fg = mk_ref[:, 0, :, :].astype(jnp.float32)       # (1, TR, 128)
    if CM == 1:
        bg = 1.0 - fg
    else:
        bg = mk_ref[:, 1, :, :].astype(jnp.float32)

    odt = out_ref.dtype
    for c in range(C1):                               # ct block
        coef = 1.0 + fg * wf_ref[0, c] - bg * wb_ref[0, c]
        out_ref[:, c, :, :] = (ct_ref[:, c, :, :].astype(jnp.float32) * coef).astype(odt)
    for c in range(C1):                               # pet block
        coef = 1.0 + fg * wf_ref[0, C1 + c] - bg * wb_ref[0, C1 + c]
        out_ref[:, C1 + c, :, :] = (pet_ref[:, c, :, :].astype(jnp.float32) * coef).astype(odt)
    for c in range(C2):                               # f_hi block (no spatial mask)
        scale = 1.0 + wf_ref[0, 2 * C1 + c] - wb_ref[0, 2 * C1 + c]
        out_ref[:, 2 * C1 + c, :, :] = (fh_ref[:, c, :, :].astype(jnp.float32) * scale).astype(odt)


# ---------------------------------------------------------------------------
# Adaptive_Weighting excitation MLP (tiny: Ctot x Ctot//2 x Ctot) -> JAX glue.
# ---------------------------------------------------------------------------
def aw_excite(pooled, params):
    w1, b1, w2, b2 = params
    h = jax.nn.relu(pooled @ w1 + b1)
    return jax.nn.sigmoid(h @ w2 + b2)                # (N, Ctot) channel weights


def init_aw_params(key, ctot):
    hidden = max(ctot // 2, 1)
    k1, k2, k3, k4 = jax.random.split(key, 4)
    w1 = jax.random.normal(k1, (ctot, hidden), jnp.float32) * 0.2
    b1 = jax.random.normal(k2, (hidden,), jnp.float32) * 0.05
    w2 = jax.random.normal(k3, (hidden, ctot), jnp.float32) * 0.2
    b2 = jax.random.normal(k4, (ctot,), jnp.float32) * 0.05
    return (w1, b1, w2, b2)


# ---------------------------------------------------------------------------
# Full TAMW forward.
# ---------------------------------------------------------------------------
def tamw_forward(ct, pet, f_hi, p_hi, params_fore, params_back, *,
                 io_dtype=jnp.float32, max_rows=256):
    N, C1, D, H, W = ct.shape
    C2 = f_hi.shape[1]
    NC = p_hi.shape[1]
    Ctot = 2 * C1 + C2
    S = D * H * W

    # ---- foreground / background probabilities (computed once, shared) ----
    if NC == 2:
        # softmax(upsample(p))[:, 1] == sigmoid(upsample(p1 - p0)) exactly.
        d_hi = p_hi[:, 1:2] - p_hi[:, 0:1]
        fg = jax.nn.sigmoid(upsample_trilinear_align_corners(d_hi, 2))
        mask = fg                                     # bg rebuilt in-kernel as 1 - fg
    else:
        sm = jax.nn.softmax(upsample_trilinear_align_corners(p_hi, 2), axis=1)
        mask = jnp.concatenate([sm[:, 1:2], sm[:, 0:1]], axis=1)   # [fg, bg]
    CM = mask.shape[1]

    # ---- lane-dense tiling --------------------------------------------------
    R = -(-S // LANE)                                 # rows of 128 lanes
    if R <= max_rows:
        TR, R_pad = R, R                              # single tile (full-dim block)
    else:
        TR = max(SUBLANE, (max_rows // SUBLANE) * SUBLANE)
        R_pad = -(-R // TR) * TR
    S_pad = R_pad * LANE
    num_tiles = R_pad // TR

    def to_tiles(x):
        n, c = x.shape[:2]
        x = x.reshape(n, c, S)
        if S_pad != S:
            x = jnp.pad(x, ((0, 0), (0, 0), (0, S_pad - S)))
        return x.reshape(n, c, R_pad, LANE).astype(io_dtype)

    ct_t = to_tiles(ct)
    pet_t = to_tiles(pet)
    fh_t = to_tiles(f_hi)
    mk_t = to_tiles(mask)

    itemsize = jnp.dtype(io_dtype).itemsize
    tile_bytes = (2 * C1 + C2 + CM + Ctot) * TR * LANE * itemsize
    vmem_limit = int(min(max(4 * tile_bytes, 32 * 1024 * 1024), 48 * 1024 * 1024))

    def feat_spec(C):
        return pl.BlockSpec((1, C, TR, LANE), lambda n, t: (n, 0, t, 0))

    # ---- kernel 1: masked global average pooling (S-tile reduction) -------
    pooled_fore, pooled_back = pl.pallas_call(
        functools.partial(pool_kernel, C1=C1, C2=C2, CM=CM, inv_S=1.0 / S),
        grid=(N, num_tiles),
        in_specs=[feat_spec(C1), feat_spec(C1), feat_spec(C2), feat_spec(CM)],
        out_specs=[
            pl.BlockSpec((1, Ctot, 1, 1), lambda n, t: (n, 0, 0, 0)),
            pl.BlockSpec((1, Ctot, 1, 1), lambda n, t: (n, 0, 0, 0)),
        ],
        out_shape=[
            jax.ShapeDtypeStruct((N, Ctot, 1, 1), jnp.float32),
            jax.ShapeDtypeStruct((N, Ctot, 1, 1), jnp.float32),
        ],
        compiler_params=pltpu.CompilerParams(
            dimension_semantics=("parallel", "arbitrary"),
            vmem_limit_bytes=vmem_limit),
    )(ct_t, pet_t, fh_t, mk_t)

    pooled_fore = pooled_fore[:, :, 0, 0]             # (N, Ctot)
    pooled_back = pooled_back[:, :, 0, 0]

    # tiny excitation MLPs (Adaptive_Weighting fore / back) in plain JAX glue
    w_fore = aw_excite(pooled_fore, params_fore).astype(jnp.float32)
    w_back = aw_excite(pooled_back, params_back).astype(jnp.float32)

    smem_spec = pl.BlockSpec((1, Ctot), lambda n, t: (n, 0),
                             memory_space=pltpu.MemorySpace.SMEM)

    # ---- kernel 2: fused enhancement (independent S tiles) ----------------
    out = pl.pallas_call(
        functools.partial(enhance_kernel, C1=C1, C2=C2, CM=CM),
        grid=(N, num_tiles),
        in_specs=[smem_spec, smem_spec,
                  feat_spec(C1), feat_spec(C1), feat_spec(C2), feat_spec(CM)],
        out_specs=pl.BlockSpec((1, Ctot, TR, LANE), lambda n, t: (n, 0, t, 0)),
        out_shape=jax.ShapeDtypeStruct((N, Ctot, R_pad, LANE), io_dtype),
        compiler_params=pltpu.CompilerParams(
            dimension_semantics=("parallel", "parallel"),
            vmem_limit_bytes=vmem_limit),
    )(w_fore, w_back, ct_t, pet_t, fh_t, mk_t)

    out = out.reshape(N, Ctot, S_pad)
    if S_pad != S:
        out = out[:, :, :S]
    return out.reshape(N, Ctot, D, H, W).astype(jnp.float32)


# ---------------------------------------------------------------------------
# Pure-JAX reference of the identical math (correctness check).
# ---------------------------------------------------------------------------
def tamw_reference(ct, pet, f_hi, p_hi, params_fore, params_back):
    C1 = ct.shape[1]
    p_up = upsample_trilinear_align_corners(p_hi, 2)
    sm = jax.nn.softmax(p_up, axis=1)
    fg = sm[:, 1:2]
    bg = sm[:, 0:1]

    def aw(ct_m, pet_m, fh, params):
        x = jnp.concatenate([ct_m, pet_m, fh], axis=1)
        pooled = jnp.mean(x, axis=(2, 3, 4))
        w = aw_excite(pooled, params)[:, :, None, None, None]
        return (ct_m * w[:, :C1], pet_m * w[:, C1:2 * C1], fh * w[:, 2 * C1:])

    f_fore = aw(ct * fg, pet * fg, f_hi, params_fore)
    f_back = aw(ct * bg, pet * bg, f_hi, params_back)
    base = jnp.concatenate([ct, pet, f_hi], axis=1)
    return base + jnp.concatenate(f_fore, axis=1) - jnp.concatenate(f_back, axis=1)


if __name__ == "__main__":
    def run_case(N, C1, C2, NC, D, H, W, max_rows):
        Ctot = 2 * C1 + C2
        key = jax.random.PRNGKey(0)
        k_ct, k_pet, k_fh, k_p, k_awf, k_awb = jax.random.split(key, 6)
        ct = jax.random.normal(k_ct, (N, C1, D, H, W), jnp.float32)
        pet = jax.random.normal(k_pet, (N, C1, D, H, W), jnp.float32)
        f_hi = jax.random.normal(k_fh, (N, C2, D, H, W), jnp.float32)
        p_hi = jax.random.normal(k_p, (N, NC, D // 2, H // 2, W // 2), jnp.float32)
        params_fore = init_aw_params(k_awf, Ctot)
        params_back = init_aw_params(k_awb, Ctot)

        out = tamw_forward(ct, pet, f_hi, p_hi, params_fore, params_back,
                           max_rows=max_rows)
        out = jax.block_until_ready(out)
        ref = jax.block_until_ready(
            tamw_reference(ct, pet, f_hi, p_hi, params_fore, params_back))

        assert out.shape == (N, Ctot, D, H, W), out.shape
        err = float(jnp.max(jnp.abs(out - ref)))
        assert err < 1e-3, err

    # single-tile case: S = 8^3 = 512 -> 4 rows of 128 lanes, one S tile
    run_case(N=2, C1=4, C2=8, NC=2, D=8, H=8, W=8, max_rows=256)
    # multi-tile case exercising the S-tile reduction: S = 16^3 -> 32 rows, TR=8, 4 tiles
    run_case(N=2, C1=4, C2=8, NC=2, D=16, H=16, W=16, max_rows=8)

    print("KERNEL_OK")
</pallas_src>

<mosaic_0001>
module attributes {stable_mosaic.version = 11 : i64} {
  func.func @pool_kernel(%arg0: i32, %arg1: i32, %arg2: memref<1x4x4x128xf32, #tpu.memory_space<vmem>>, %arg3: memref<1x4x4x128xf32, #tpu.memory_space<vmem>>, %arg4: memref<1x8x4x128xf32, #tpu.memory_space<vmem>>, %arg5: memref<1x1x4x128xf32, #tpu.memory_space<vmem>>, %arg6: memref<1x16x1x1xf32, #tpu.memory_space<vmem>>, %arg7: memref<1x16x1x1xf32, #tpu.memory_space<vmem>>) attributes {dimension_semantics = [#tpu.dimension_semantics<parallel>, #tpu.dimension_semantics<arbitrary>], iteration_bounds = array<i64: 2, 1>, scalar_prefetch = 0 : i64, scratch_operands = 0 : i64, tpu.core_type = #tpu.core_type<tc>, window_params = [{transform_indices = @transform_0, window_bounds = array<i64: 1, 4, 4, 128>}, {transform_indices = @transform_1, window_bounds = array<i64: 1, 4, 4, 128>}, {transform_indices = @transform_2, window_bounds = array<i64: 1, 8, 4, 128>}, {transform_indices = @transform_3, window_bounds = array<i64: 1, 1, 4, 128>}, {transform_indices = @transform_4, window_bounds = array<i64: 1, 16, 1, 1>}, {transform_indices = @transform_5, window_bounds = array<i64: 1, 16, 1, 1>}]} {
    %c0_i32 = arith.constant 0 : i32
    %0 = arith.cmpi eq, %arg1, %c0_i32 : i32
    %1 = arith.extui %0 : i1 to i32
    %c0_i32_0 = arith.constant 0 : i32
    %2 = arith.cmpi ne, %1, %c0_i32_0 : i32
    scf.if %2 {
      %cst_74 = arith.constant 0.000000e+00 : f32
      %58 = vector.broadcast %cst_74 : f32 to vector<1x16x1x1xf32>
      %c0_75 = arith.constant 0 : index
      %c0_76 = arith.constant 0 : index
      %c0_77 = arith.constant 0 : index
      %c0_78 = arith.constant 0 : index
      %59 = vector.load %arg6[%c0_75, %c0_76, %c0_77, %c0_78] : memref<1x16x1x1xf32, #tpu.memory_space<vmem>>, vector<1x16x1x1xf32>
      tpu.vector_store %arg6[%c0_75, %c0_76, %c0_77, %c0_78], %58 {strides = array<i32>} : memref<1x16x1x1xf32, #tpu.memory_space<vmem>>, vector<1x16x1x1xf32>,
      %cst_79 = arith.constant 0.000000e+00 : f32
      %60 = vector.broadcast %cst_79 : f32 to vector<1x16x1x1xf32>
      %c0_80 = arith.constant 0 : index
      %c0_81 = arith.constant 0 : index
      %c0_82 = arith.constant 0 : index
      %c0_83 = arith.constant 0 : index
      %61 = vector.load %arg7[%c0_80, %c0_81, %c0_82, %c0_83] : memref<1x16x1x1xf32, #tpu.memory_space<vmem>>, vector<1x16x1x1xf32>
      tpu.vector_store %arg7[%c0_80, %c0_81, %c0_82, %c0_83], %60 {strides = array<i32>} : memref<1x16x1x1xf32, #tpu.memory_space<vmem>>, vector<1x16x1x1xf32>,
    } else {
    }
    %c0 = arith.constant 0 : index
    %c0_1 = arith.constant 0 : index
    %c0_2 = arith.constant 0 : index
    %c0_3 = arith.constant 0 : index
    %3 = vector.load %arg2[%c0, %c0_1, %c0_2, %c0_3] : memref<1x4x4x128xf32, #tpu.memory_space<vmem>>, vector<1x4x4x128xf32>
    %c0_4 = arith.constant 0 : index
    %c0_5 = arith.constant 0 : index
    %c0_6 = arith.constant 0 : index
    %c0_7 = arith.constant 0 : index
    %4 = vector.load %arg3[%c0_4, %c0_5, %c0_6, %c0_7] : memref<1x4x4x128xf32, #tpu.memory_space<vmem>>, vector<1x4x4x128xf32>
    %c0_8 = arith.constant 0 : index
    %c0_9 = arith.constant 0 : index
    %c0_10 = arith.constant 0 : index
    %c0_11 = arith.constant 0 : index
    %5 = vector.load %arg4[%c0_8, %c0_9, %c0_10, %c0_11] : memref<1x8x4x128xf32, #tpu.memory_space<vmem>>, vector<1x8x4x128xf32>
    %c0_12 = arith.constant 0 : index
    %c0_13 = arith.constant 0 : index
    %c0_14 = arith.constant 0 : index
    %c0_15 = arith.constant 0 : index
    %6 = vector.load %arg5[%c0_12, %c0_13, %c0_14, %c0_15] : memref<1x1x4x128xf32, #tpu.memory_space<vmem>>, vector<1x1x4x128xf32>
    %cst = arith.constant 1.000000e+00 : f32
    %7 = vector.broadcast %cst : f32 to vector<1x1x4x128xf32>
    %8 = arith.subf %7, %6 : vector<1x1x4x128xf32>
    %cst_16 = arith.constant dense<0.000000e+00> : vector<1x8x4xf32>
    %9 = vector.multi_reduction <add>, %5, %cst_16 [3] : vector<1x8x4x128xf32> to vector<1x8x4xf32>
    %10 = vector.shape_cast %9 : vector<1x8x4xf32> to vector<1x8x4x1xf32>
    %cst_17 = arith.constant dense<0.000000e+00> : vector<1x8x1xf32>
    %11 = vector.multi_reduction <add>, %10, %cst_17 [2] : vector<1x8x4x1xf32> to vector<1x8x1xf32>
    %12 = vector.shape_cast %11 : vector<1x8x1xf32> to vector<1x8x1x1xf32>
    %c0_18 = arith.constant 0 : index
    %c0_19 = arith.constant 0 : index
    %c0_20 = arith.constant 0 : index
    %c0_21 = arith.constant 0 : index
    %13 = vector.load %arg6[%c0_18, %c0_19, %c0_20, %c0_21] : memref<1x16x1x1xf32, #tpu.memory_space<vmem>>, vector<1x4x1x1xf32>
    %14 = vector.broadcast %6 : vector<1x1x4x128xf32> to vector<1x4x4x128xf32>
    %15 = arith.mulf %3, %14 : vector<1x4x4x128xf32>
    %cst_22 = arith.constant dense<0.000000e+00> : vector<1x4x4xf32>
    %16 = vector.multi_reduction <add>, %15, %cst_22 [3] : vector<1x4x4x128xf32> to vector<1x4x4xf32>
    %17 = vector.shape_cast %16 : vector<1x4x4xf32> to vector<1x4x4x1xf32>
    %cst_23 = arith.constant dense<0.000000e+00> : vector<1x4x1xf32>
    %18 = vector.multi_reduction <add>, %17, %cst_23 [2] : vector<1x4x4x1xf32> to vector<1x4x1xf32>
    %19 = vector.shape_cast %18 : vector<1x4x1xf32> to vector<1x4x1x1xf32>
    %20 = arith.addf %13, %19 : vector<1x4x1x1xf32>
    %c0_24 = arith.constant 0 : index
    %c0_25 = arith.constant 0 : index
    %c0_26 = arith.constant 0 : index
    %c0_27 = arith.constant 0 : index
    %21 = vector.load %arg6[%c0_24, %c0_25, %c0_26, %c0_27] : memref<1x16x1x1xf32, #tpu.memory_space<vmem>>, vector<1x4x1x1xf32>
    tpu.vector_store %arg6[%c0_24, %c0_25, %c0_26, %c0_27], %20 {strides = array<i32>} : memref<1x16x1x1xf32, #tpu.memory_space<vmem>>, vector<1x4x1x1xf32>,
    %c0_28 = arith.constant 0 : index
    %c4 = arith.constant 4 : index
    %c0_29 = arith.constant 0 : index
    %c0_30 = arith.constant 0 : index
    %22 = vector.load %arg6[%c0_28, %c4, %c0_29, %c0_30] : memref<1x16x1x1xf32, #tpu.memory_space<vmem>>, vector<1x4x1x1xf32>
    %23 = vector.broadcast %6 : vector<1x1x4x128xf32> to vector<1x4x4x128xf32>
    %24 = arith.mulf %4, %23 : vector<1x4x4x128xf32>
    %cst_31 = arith.constant dense<0.000000e+00> : vector<1x4x4xf32>
    %25 = vector.multi_reduction <add>, %24, %cst_31 [3] : vector<1x4x4x128xf32> to vector<1x4x4xf32>
    %26 = vector.shape_cast %25 : vector<1x4x4xf32> to vector<1x4x4x1xf32>
    %cst_32 = arith.constant dense<0.000000e+00> : vector<1x4x1xf32>
    %27 = vector.multi_reduction <add>, %26, %cst_32 [2] : vector<1x4x4x1xf32> to vector<1x4x1xf32>
    %28 = vector.shape_cast %27 : vector<1x4x1xf32> to vector<1x4x1x1xf32>
    %29 = arith.addf %22, %28 : vector<1x4x1x1xf32>
    %c0_33 = arith.constant 0 : index
    %c4_34 = arith.constant 4 : index
    %c0_35 = arith.constant 0 : index
    %c0_36 = arith.constant 0 : index
    %30 = vector.load %arg6[%c0_33, %c4_34, %c0_35, %c0_36] : memref<1x16x1x1xf32, #tpu.memory_space<vmem>>, vector<1x4x1x1xf32>
    tpu.vector_store %arg6[%c0_33, %c4_34, %c0_35, %c0_36], %29 {strides = array<i32>} : memref<1x16x1x1xf32, #tpu.memory_space<vmem>>, vector<1x4x1x1xf32>,
    %c0_37 = arith.constant 0 : index
    %c8 = arith.constant 8 : index
    %c0_38 = arith.constant 0 : index
    %c0_39 = arith.constant 0 : index
    %31 = vector.load %arg6[%c0_37, %c8, %c0_38, %c0_39] : memref<1x16x1x1xf32, #tpu.memory_space<vmem>>, vector<1x8x1x1xf32>
    %32 = arith.addf %31, %12 : vector<1x8x1x1xf32>
    %c0_40 = arith.constant 0 : index
    %c8_41 = arith.constant 8 : index
    %c0_42 = arith.constant 0 : index
    %c0_43 = arith.constant 0 : index
    %33 = vector.load %arg6[%c0_40, %c8_41, %c0_42, %c0_43] : memref<1x16x1x1xf32, #tpu.memory_space<vmem>>, vector<1x8x1x1xf32>
    tpu.vector_store %arg6[%c0_40, %c8_41, %c0_42, %c0_43], %32 {strides = array<i32>} : memref<1x16x1x1xf32, #tpu.memory_space<vmem>>, vector<1x8x1x1xf32>,
    %c0_44 = arith.constant 0 : index
    %c0_45 = arith.constant 0 : index
    %c0_46 = arith.constant 0 : index
    %c0_47 = arith.constant 0 : index
    %34 = vector.load %arg7[%c0_44, %c0_45, %c0_46, %c0_47] : memref<1x16x1x1xf32, #tpu.memory_space<vmem>>, vector<1x4x1x1xf32>
    %35 = vector.broadcast %8 : vector<1x1x4x128xf32> to vector<1x4x4x128xf32>
    %36 = arith.mulf %3, %35 : vector<1x4x4x128xf32>
    %cst_48 = arith.constant dense<0.000000e+00> : vector<1x4x4xf32>
    %37 = vector.multi_reduction <add>, %36, %cst_48 [3] : vector<1x4x4x128xf32> to vector<1x4x4xf32>
    %38 = vector.shape_cast %37 : vector<1x4x4xf32> to vector<1x4x4x1xf32>
    %cst_49 = arith.constant dense<0.000000e+00> : vector<1x4x1xf32>
    %39 = vector.multi_reduction <add>, %38, %cst_49 [2] : vector<1x4x4x1xf32> to vector<1x4x1xf32>
    %40 = vector.shape_cast %39 : vector<1x4x1xf32> to vector<1x4x1x1xf32>
    %41 = arith.addf %34, %40 : vector<1x4x1x1xf32>
    %c0_50 = arith.constant 0 : index
    %c0_51 = arith.constant 0 : index
    %c0_52 = arith.constant 0 : index
    %c0_53 = arith.constant 0 : index
    %42 = vector.load %arg7[%c0_50, %c0_51, %c0_52, %c0_53] : memref<1x16x1x1xf32, #tpu.memory_space<vmem>>, vector<1x4x1x1xf32>
    tpu.vector_store %arg7[%c0_50, %c0_51, %c0_52, %c0_53], %41 {strides = array<i32>} : memref<1x16x1x1xf32, #tpu.memory_space<vmem>>, vector<1x4x1x1xf32>,
    %c0_54 = arith.constant 0 : index
    %c4_55 = arith.constant 4 : index
    %c0_56 = arith.constant 0 : index
    %c0_57 = arith.constant 0 : index
    %43 = vector.load %arg7[%c0_54, %c4_55, %c0_56, %c0_57] : memref<1x16x1x1xf32, #tpu.memory_space<vmem>>, vector<1x4x1x1xf32>
    %44 = vector.broadcast %8 : vector<1x1x4x128xf32> to vector<1x4x4x128xf32>
    %45 = arith.mulf %4, %44 : vector<1x4x4x128xf32>
    %cst_58 = arith.constant dense<0.000000e+00> : vector<1x4x4xf32>
    %46 = vector.multi_reduction <add>, %45, %cst_58 [3] : vector<1x4x4x128xf32> to vector<1x4x4xf32>
    %47 = vector.shape_cast %46 : vector<1x4x4xf32> to vector<1x4x4x1xf32>
    %cst_59 = arith.constant dense<0.000000e+00> : vector<1x4x1xf32>
    %48 = vector.multi_reduction <add>, %47, %cst_59 [2] : vector<1x4x4x1xf32> to vector<1x4x1xf32>
    %49 = vector.shape_cast %48 : vector<1x4x1xf32> to vector<1x4x1x1xf32>
    %50 = arith.addf %43, %49 : vector<1x4x1x1xf32>
    %c0_60 = arith.constant 0 : index
    %c4_61 = arith.constant 4 : index
    %c0_62 = arith.constant 0 : index
    %c0_63 = arith.constant 0 : index
    %51 = vector.load %arg7[%c0_60, %c4_61, %c0_62, %c0_63] : memref<1x16x1x1xf32, #tpu.memory_space<vmem>>, vector<1x4x1x1xf32>
    tpu.vector_store %arg7[%c0_60, %c4_61, %c0_62, %c0_63], %50 {strides = array<i32>} : memref<1x16x1x1xf32, #tpu.memory_space<vmem>>, vector<1x4x1x1xf32>,
    %c0_64 = arith.constant 0 : index
    %c8_65 = arith.constant 8 : index
    %c0_66 = arith.constant 0 : index
    %c0_67 = arith.constant 0 : index
    %52 = vector.load %arg7[%c0_64, %c8_65, %c0_66, %c0_67] : memref<1x16x1x1xf32, #tpu.memory_space<vmem>>, vector<1x8x1x1xf32>
    %53 = arith.addf %52, %12 : vector<1x8x1x1xf32>
    %c0_68 = arith.constant 0 : index
    %c8_69 = arith.constant 8 : index
    %c0_70 = arith.constant 0 : index
    %c0_71 = arith.constant 0 : index
    %54 = vector.load %arg7[%c0_68, %c8_69, %c0_70, %c0_71] : memref<1x16x1x1xf32, #tpu.memory_space<vmem>>, vector<1x8x1x1xf32>
    tpu.vector_store %arg7[%c0_68, %c8_69, %c0_70, %c0_71], %53 {strides = array<i32>} : memref<1x16x1x1xf32, #tpu.memory_space<vmem>>, vector<1x8x1x1xf32>,
    %c0_i32_72 = arith.constant 0 : i32
    %55 = arith.cmpi eq, %arg1, %c0_i32_72 : i32
    %56 = arith.extui %55 : i1 to i32
    %c0_i32_73 = arith.constant 0 : i32
    %57 = arith.cmpi ne, %56, %c0_i32_73 : i32
    scf.if %57 {
      %c0_74 = arith.constant 0 : index
      %c0_75 = arith.constant 0 : index
      %c0_76 = arith.constant 0 : index
      %c0_77 = arith.constant 0 : index
      %58 = vector.load %arg6[%c0_74, %c0_75, %c0_76, %c0_77] : memref<1x16x1x1xf32, #tpu.memory_space<vmem>>, vector<1x16x1x1xf32>
      %cst_78 = arith.constant 0.001953125 : f32
      %59 = vector.broadcast %cst_78 : f32 to vector<1x16x1x1xf32>
      %60 = arith.mulf %58, %59 : vector<1x16x1x1xf32>
      %c0_79 = arith.constant 0 : index
      %c0_80 = arith.constant 0 : index
      %c0_81 = arith.constant 0 : index
      %c0_82 = arith.constant 0 : index
      %61 = vector.load %arg6[%c0_79, %c0_80, %c0_81, %c0_82] : memref<1x16x1x1xf32, #tpu.memory_space<vmem>>, vector<1x16x1x1xf32>
      tpu.vector_store %arg6[%c0_79, %c0_80, %c0_81, %c0_82], %60 {strides = array<i32>} : memref<1x16x1x1xf32, #tpu.memory_space<vmem>>, vector<1x16x1x1xf32>,
      %c0_83 = arith.constant 0 : index
      %c0_84 = arith.constant 0 : index
      %c0_85 = arith.constant 0 : index
      %c0_86 = arith.constant 0 : index
      %62 = vector.load %arg7[%c0_83, %c0_84, %c0_85, %c0_86] : memref<1x16x1x1xf32, #tpu.memory_space<vmem>>, vector<1x16x1x1xf32>
      %cst_87 = arith.constant 0.001953125 : f32
      %63 = vector.broadcast %cst_87 : f32 to vector<1x16x1x1xf32>
      %64 = arith.mulf %62, %63 : vector<1x16x1x1xf32>
      %c0_88 = arith.constant 0 : index
      %c0_89 = arith.constant 0 : index
      %c0_90 = arith.constant 0 : index
      %c0_91 = arith.constant 0 : index
      %65 = vector.load %arg7[%c0_88, %c0_89, %c0_90, %c0_91] : memref<1x16x1x1xf32, #tpu.memory_space<vmem>>, vector<1x16x1x1xf32>
      tpu.vector_store %arg7[%c0_88, %c0_89, %c0_90, %c0_91], %64 {strides = array<i32>} : memref<1x16x1x1xf32, #tpu.memory_space<vmem>>, vector<1x16x1x1xf32>,
    } else {
    }
    return
  }
  func.func @transform_0(%arg0: i32, %arg1: i32) -> (i32, i32, i32, i32) {
    %c0_i32 = arith.constant 0 : i32
    %c0_i32_0 = arith.constant 0 : i32
    %c0_i32_1 = arith.constant 0 : i32
    return %arg0, %c0_i32, %arg1, %c0_i32_0 : i32, i32, i32, i32
  }
  func.func @transform_1(%arg0: i32, %arg1: i32) -> (i32, i32, i32, i32) {
    %c0_i32 = arith.constant 0 : i32
    %c0_i32_0 = arith.constant 0 : i32
    %c0_i32_1 = arith.constant 0 : i32
    return %arg0, %c0_i32, %arg1, %c0_i32_0 : i32, i32, i32, i32
  }
  func.func @transform_2(%arg0: i32, %arg1: i32) -> (i32, i32, i32, i32) {
    %c0_i32 = arith.constant 0 : i32
    %c0_i32_0 = arith.constant 0 : i32
    %c0_i32_1 = arith.constant 0 : i32
    return %arg0, %c0_i32, %arg1, %c0_i32_0 : i32, i32, i32, i32
  }
  func.func @transform_3(%arg0: i32, %arg1: i32) -> (i32, i32, i32, i32) {
    %c0_i32 = arith.constant 0 : i32
    %c0_i32_0 = arith.constant 0 : i32
    %c0_i32_1 = arith.constant 0 : i32
    return %arg0, %c0_i32, %arg1, %c0_i32_0 : i32, i32, i32, i32
  }
  func.func @transform_4(%arg0: i32, %arg1: i32) -> (i32, i32, i32, i32) {
    %c0_i32 = arith.constant 0 : i32
    %c0_i32_0 = arith.constant 0 : i32
    %c0_i32_1 = arith.constant 0 : i32
    %c0_i32_2 = arith.constant 0 : i32
    return %arg0, %c0_i32, %c0_i32_0, %c0_i32_1 : i32, i32, i32, i32
  }
  func.func @transform_5(%arg0: i32, %arg1: i32) -> (i32, i32, i32, i32) {
    %c0_i32 = arith.constant 0 : i32
    %c0_i32_0 = arith.constant 0 : i32
    %c0_i32_1 = arith.constant 0 : i32
    %c0_i32_2 = arith.constant 0 : i32
    return %arg0, %c0_i32, %c0_i32_0, %c0_i32_1 : i32, i32, i32, i32
  }
}

</mosaic_0001>

<llo_original>
// kernel: tpu_custom_call.1
$region0: #{tpu_custom_call.1}
  #allocation0 [shape = 'u32[]', space=smem, size = 0x4, offset = 0x4, fixed_abs, tag = 'smem constant byte address 0x4 - core index']
  #allocation1 [shape = 'u32[144,128]{1,0:T(1,128)}', space=vmem, size = 0x12000, scoped, tag = 'internal scratch']
  %s0 = inlined_call_operand.hbm [shape: f32[2,4,4,128], index: 0, kind: input, shape index: {}]
  %s1 = inlined_call_operand.hbm [shape: f32[2,4,4,128], index: 1, kind: input, shape index: {}]
  %s2 = inlined_call_operand.hbm [shape: f32[2,8,4,128], index: 2, kind: input, shape index: {}]
  %s3 = inlined_call_operand.hbm [shape: f32[2,1,4,128], index: 3, kind: input, shape index: {}]
  %s4 = inlined_call_operand.vmem [shape: f32[2,16,1,1], index: 4, kind: output, shape index: {0}]
  %s5 = inlined_call_operand.vmem [shape: f32[2,16,1,1], index: 5, kind: output, shape index: {1}]
  %6 = xla_tuple %s4, %s5
  %s7 = sld [smem:[#allocation0]]
  $region81: #{tpu_custom_call.1} parent=0
    _
  %s9 = ssub.s32 1, %s7
  %s10 = scalar_select 0, %s9, %s7
  $region1: #{tpu_custom_call.1} parent=0
    #allocation2 [shape = 'u8[16384]{0}', space=vmem, size = 0x4000, scoped, tag = 'input window, operand 0']
    #allocation3 [shape = 's32[2]{0}', space=sflag, size = 0x8, scoped, tag = 'scoped memory for tpu_custom_call.1']
    #allocation4 [shape = 'u8[16384]{0}', space=vmem, size = 0x4000, scoped, tag = 'input window, operand 1']
    #allocation5 [shape = 's32[2]{0}', space=sflag, size = 0x8, scoped, tag = 'scoped memory for tpu_custom_call.1']
    #allocation6 [shape = 'u8[32768]{0}', space=vmem, size = 0x8000, scoped, tag = 'input window, operand 2']
    #allocation7 [shape = 'u8[4096]{0}', space=vmem, size = 0x1000, scoped, tag = 'input window, operand 3']
    #allocation8 [shape = 's32[2]{0}', space=sflag, size = 0x8, scoped, tag = 'scoped memory for tpu_custom_call.1']
    %11 = vsyncpa [#allocation3], 0
    %s12 = scalar_lea.sflag [#allocation3], 1
    %13 = vsyncpa %s12, 0
    %14 = vsyncpa [#allocation5], 0
    %s15 = scalar_lea.sflag [#allocation5], 1
    %16 = vsyncpa %s15, 0
    %17 = vsyncpa [#allocation8], 0
    %s18 = scalar_lea.sflag [#allocation8], 1
    %19 = vsyncpa %s18, 0
    loop: start=0, step=1, limit=4
    $region2: #{tpu_custom_call.1} parent=1 // loop_pre_header
      _
    $region3: #{tpu_custom_call.1} parent=1 // loop_header
      %s21 = sphi 0, %s25
      %p22 = scmp.ge.s32.totalorder %s21, 4
      %s28 = sphi 0, %s40
      %s29 = sphi 0, %s36
      %s30 = sphi 0, %s28
      %s31 = sphi 0, %s29
      %s32 = sphi 0, %s30
      %s33 = sphi 0, %s31
      %s45 = sphi 0, %s47
      %s48 = sphi 0, %s45
      %s49 = sphi 0, %s48
      %s65 = sphi 0, %s49
      %s73 = sphi 0, %s75
      %s76 = sphi 0, %s73
      %s77 = sphi 0, %s76
      %s93 = sphi 0, %s77
      %s101 = sphi 0, %s103
      %s104 = sphi 0, %s101
      %s105 = sphi 0, %s104
      %s121 = sphi 0, %s105
      %s129 = sphi 0, %s131
      %s132 = sphi 0, %s129
      %s133 = sphi 0, %s132
      %s149 = sphi 0, %s133
      %s155 = sphi 0, %s157
      %s158 = sphi 0, %s155
      %s159 = sphi 0, %s158
      %s175 = sphi 0, %s159
      %s181 = sphi 0, %s183
      %s184 = sphi 0, %s181
      %s185 = sphi 0, %s184
      %s201 = sphi 0, %s185
    $region4: #{tpu_custom_call.1} parent=1 // loop_header_branch
      %24 = sbr.rel (%p22) target = $region8
    $region5: #{tpu_custom_call.1} parent=1 // loop_body
      %s26 = ssub.s32 %s21, 1
      %s27 = ssub.s32 %s21, 2
      %s34 = sadd.s32 1, %s29
      %p35 = scmp.ge.s32.totalorder %s34, 1
      %s36 = scalar_select %p35, 0, %s34
      %s37 = sadd.s32 1, %s28
      %s38 = scalar_select %p35, %s37, %s28
      %p39 = scmp.ge.s32.totalorder %s38, 2
      %s40 = scalar_select %p39, 0, %s38
      %s41 = ssub.s32 %s28, %s40
      %s42 = ssub.s32 %s29, %s36
      %s43 = sor.u32 %s41, %s42
      %p44 = scmp.eq.s32.totalorder %s43, 0
      %s46 = sadd.s32 %s45, 1
      %s47 = scalar_select %p44, %s45, %s46
      %p50 = pneg %p44
      %p51 = scmp.eq.s32.totalorder %s21, 1
      %p52 = por %p50, %p51
      %p53 = scmp.ne.s32.totalorder %s45, %s48
      %p54 = scmp.eq.s32.totalorder %s21, 0
      %p55 = por %p53, %p54
      %p56 = scmp.ne.s32.totalorder %s45, %s48
      %p57 = scmp.eq.s32.totalorder %s26, 1
      %p58 = por %p56, %p57
      %p59 = scmp.ne.s32.totalorder %s48, %s49
      %p60 = scmp.eq.s32.totalorder %s26, 0
      %p61 = por %p59, %p60
      %p62 = scmp.ne.s32.totalorder %s48, %s49
      %p63 = scmp.eq.s32.totalorder %s27, 1
      %p64 = por %p62, %p63
      %p66 = scmp.ne.s32.totalorder %s49, %s65
      %p67 = scmp.eq.s32.totalorder %s27, 0
      %p68 = por %p66, %p67
      %s69 = ssub.s32 %s28, %s40
      %s70 = ssub.s32 %s29, %s36
      %s71 = sor.u32 %s69, %s70
      %p72 = scmp.eq.s32.totalorder %s71, 0
      %s74 = sadd.s32 %s73, 1
      %s75 = scalar_select %p72, %s73, %s74
      %p78 = pneg %p72
      %p79 = scmp.eq.s32.totalorder %s21, 1
      %p80 = por %p78, %p79
      %p81 = scmp.ne.s32.totalorder %s73, %s76
      %p82 = scmp.eq.s32.totalorder %s21, 0
      %p83 = por %p81, %p82
      %p84 = scmp.ne.s32.totalorder %s73, %s76
      %p85 = scmp.eq.s32.totalorder %s26, 1
      %p86 = por %p84, %p85
      %p87 = scmp.ne.s32.totalorder %s76, %s77
      %p88 = scmp.eq.s32.totalorder %s26, 0
      %p89 = por %p87, %p88
      %p90 = scmp.ne.s32.totalorder %s76, %s77
      %p91 = scmp.eq.s32.totalorder %s27, 1
      %p92 = por %p90, %p91
      %p94 = scmp.ne.s32.totalorder %s77, %s93
      %p95 = scmp.eq.s32.totalorder %s27, 0
      %p96 = por %p94, %p95
      %s97 = ssub.s32 %s28, %s40
      %s98 = ssub.s32 %s29, %s36
      %s99 = sor.u32 %s97, %s98
      %p100 = scmp.eq.s32.totalorder %s99, 0
      %s102 = sadd.s32 %s101, 1
      %s103 = scalar_select %p100, %s101, %s102
      %p106 = pneg %p100
      %p107 = scmp.eq.s32.totalorder %s21, 1
      %p108 = por %p106, %p107
      %p109 = scmp.ne.s32.totalorder %s101, %s104
      %p110 = scmp.eq.s32.totalorder %s21, 0
      %p111 = por %p109, %p110
      %p112 = scmp.ne.s32.totalorder %s101, %s104
      %p113 = scmp.eq.s32.totalorder %s26, 1
      %p114 = por %p112, %p113
      %p115 = scmp.ne.s32.totalorder %s104, %s105
      %p116 = scmp.eq.s32.totalorder %s26, 0
      %p117 = por %p115, %p116
      %p118 = scmp.ne.s32.totalorder %s104, %s105
      %p119 = scmp.eq.s32.totalorder %s27, 1
      %p120 = por %p118, %p119
      %p122 = scmp.ne.s32.totalorder %s105, %s121
      %p123 = scmp.eq.s32.totalorder %s27, 0
      %p124 = por %p122, %p123
      %s125 = ssub.s32 %s28, %s40
      %s126 = ssub.s32 %s29, %s36
      %s127 = sor.u32 %s125, %s126
      %p128 = scmp.eq.s32.totalorder %s127, 0
      %s130 = sadd.s32 %s129, 1
      %s131 = scalar_select %p128, %s129, %s130
      %p134 = pneg %p128
      %p135 = scmp.eq.s32.totalorder %s21, 1
      %p136 = por %p134, %p135
      %p137 = scmp.ne.s32.totalorder %s129, %s132
      %p138 = scmp.eq.s32.totalorder %s21, 0
      %p139 = por %p137, %p138
      %p140 = scmp.ne.s32.totalorder %s129, %s132
      %p141 = scmp.eq.s32.totalorder %s26, 1
      %p142 = por %p140, %p141
      %p143 = scmp.ne.s32.totalorder %s132, %s133
      %p144 = scmp.eq.s32.totalorder %s26, 0
      %p145 = por %p143, %p144
      %p146 = scmp.ne.s32.totalorder %s132, %s133
      %p147 = scmp.eq.s32.totalorder %s27, 1
      %p148 = por %p146, %p147
      %p150 = scmp.ne.s32.totalorder %s133, %s149
      %p151 = scmp.eq.s32.totalorder %s27, 0
      %p152 = por %p150, %p151
      %s153 = ssub.s32 %s28, %s40
      %p154 = scmp.eq.s32.totalorder %s153, 0
      %s156 = sadd.s32 %s155, 1
      %s157 = scalar_select %p154, %s155, %s156
      %p160 = pneg %p154
      %p161 = scmp.eq.s32.totalorder %s21, 1
      %p162 = por %p160, %p161
      %p163 = scmp.ne.s32.totalorder %s155, %s158
      %p164 = scmp.eq.s32.totalorder %s21, 0
      %p165 = por %p163, %p164
      %p166 = scmp.ne.s32.totalorder %s155, %s158
      %p167 = scmp.eq.s32.totalorder %s26, 1
      %p168 = por %p166, %p167
      %p169 = scmp.ne.s32.totalorder %s158, %s159
      %p170 = scmp.eq.s32.totalorder %s26, 0
      %p171 = por %p169, %p170
      %p172 = scmp.ne.s32.totalorder %s158, %s159
      %p173 = scmp.eq.s32.totalorder %s27, 1
      %p174 = por %p172, %p173
      %p176 = scmp.ne.s32.totalorder %s159, %s175
      %p177 = scmp.eq.s32.totalorder %s27, 0
      %p178 = por %p176, %p177
      %s179 = ssub.s32 %s28, %s40
      %p180 = scmp.eq.s32.totalorder %s179, 0
      %s182 = sadd.s32 %s181, 1
      %s183 = scalar_select %p180, %s181, %s182
      %p186 = pneg %p180
      %p187 = scmp.eq.s32.totalorder %s21, 1
      %p188 = por %p186, %p187
      %p189 = scmp.ne.s32.totalorder %s181, %s184
      %p190 = scmp.eq.s32.totalorder %s21, 0
      %p191 = por %p189, %p190
      %p192 = scmp.ne.s32.totalorder %s181, %s184
      %p193 = scmp.eq.s32.totalorder %s26, 1
      %p194 = por %p192, %p193
      %p195 = scmp.ne.s32.totalorder %s184, %s185
      %p196 = scmp.eq.s32.totalorder %s26, 0
      %p197 = por %p195, %p196
      %p198 = scmp.ne.s32.totalorder %s184, %s185
      %p199 = scmp.eq.s32.totalorder %s27, 1
      %p200 = por %p198, %p199
      %p202 = scmp.ne.s32.totalorder %s185, %s201
      %p203 = scmp.eq.s32.totalorder %s27, 0
      %p204 = por %p202, %p203
      %p205 = scmp.le.s32.totalorder 1, %s21
      %p206 = scmp.lt.s32.totalorder %s21, 3
      %p207 = pnand %p205, %p206
      %p208 = pneg %p207
      // Predicated region
      $region9: #{tpu_custom_call.1} parent=5 // pred_check
        _
      $region10: #{tpu_custom_call.1} parent=5 // pred_check_branch
        %210 = sbr.rel (%p207) target = $region12
      $region11: #{tpu_custom_call.1} parent=5 // pred_region
        %s211 = ssub.s32 %s21, 1
      $region12: #{tpu_custom_call.1} parent=5 // pred_fallthru
        _
      %p212 = scmp.lt.s32.totalorder %s21, 2
      // Predicated region
      $region13: #{tpu_custom_call.1} parent=5 // pred_check
        %p213 = pneg %p212
      $region14: #{tpu_custom_call.1} parent=5 // pred_check_branch
        %215 = sbr.rel (%p213) target = $region16
      $region15: #{tpu_custom_call.1} parent=5 // pred_region
        // Predicated region
        $region17: #{tpu_custom_call.1} parent=15 // pred_check
          %p216 = pneg %p55
        $region18: #{tpu_custom_call.1} parent=15 // pred_check_branch
          %218 = sbr.rel (%p216) target = $region20
        $region19: #{tpu_custom_call.1} parent=15 // pred_region
          %s219 = sand.u32 %s45, 1
          %s220 = scalar_lea.sflag [#allocation3], %s219
          %s221 = sand.u32 %s45, 1
          %s222 = smul.addr %s221, 16
          %s223 = scalar_lea.vmem [#allocation2], %s222
          %s225 = ssub.s32 256, 256
          %226 = vsyncadd %s220, %s225
          %s227 = smul.addr %s28, 4
          %s228 = sadd.s32 %s29, %s227
          %s229 = smul.addr %s228, 64
          %s230 = scalar_lea.hbm %s0, %s229
          %s231 = sshll.u32 %s223, 4
          %s232 = int_to_ptr.vmem [resolvable:$true] %s231
          %237 = dma.hbm_to_vmem [thread:$0]  %s230, 256, %s232, %s220, 64, 64, 4
        $region20: #{tpu_custom_call.1} parent=15 // pred_fallthru
          _
        // Predicated region
        $region21: #{tpu_custom_call.1} parent=15 // pred_check
          %p238 = pneg %p83
        $region22: #{tpu_custom_call.1} parent=15 // pred_check_branch
          %240 = sbr.rel (%p238) target = $region24
        $region23: #{tpu_custom_call.1} parent=15 // pred_region
          %s241 = sand.u32 %s21, 1
          %s242 = scalar_lea.sflag [#allocation5], %s241
          %s243 = sand.u32 %s73, 1
          %s244 = smul.addr %s243, 16
          %s245 = scalar_lea.vmem [#allocation4], %s244
          %s247 = ssub.s32 256, 256
          %248 = vsyncadd %s242, %s247
          %s249 = smul.addr %s28, 4
          %s250 = sadd.s32 %s29, %s249
          %s251 = smul.addr %s250, 64
          %s252 = scalar_lea.hbm %s1, %s251
          %s253 = sshll.u32 %s245, 4
          %s254 = int_to_ptr.vmem [resolvable:$true] %s253
          %259 = dma.hbm_to_vmem [thread:$0]  %s252, 256, %s254, %s242, 64, 64, 4
        $region24: #{tpu_custom_call.1} parent=15 // pred_fallthru
          _
        // Predicated region
        $region25: #{tpu_custom_call.1} parent=15 // pred_check
          %p260 = pneg %p111
        $region26: #{tpu_custom_call.1} parent=15 // pred_check_branch
          %262 = sbr.rel (%p260) target = $region28
        $region27: #{tpu_custom_call.1} parent=15 // pred_region
          %s263 = sand.u32 %s21, 1
          %s264 = scalar_lea.sflag [#allocation5], %s263
          %s265 = sand.u32 %s101, 1
          %s266 = smul.addr %s265, 32
          %s267 = scalar_lea.vmem [#allocation6], %s266
          %s269 = ssub.s32 512, 512
          %270 = vsyncadd %s264, %s269
          %s271 = smul.addr %s28, 8
          %s272 = sadd.s32 %s29, %s271
          %s273 = smul.addr %s272, 64
          %s274 = scalar_lea.hbm %s2, %s273
          %s275 = sshll.u32 %s267, 4
          %s276 = int_to_ptr.vmem [resolvable:$true] %s275
          %281 = dma.hbm_to_vmem [thread:$0]  %s274, 512, %s276, %s264, 64, 64, 4
        $region28: #{tpu_custom_call.1} parent=15 // pred_fallthru
          _
        // Predicated region
        $region29: #{tpu_custom_call.1} parent=15 // pred_check
          %p282 = pneg %p139
        $region30: #{tpu_custom_call.1} parent=15 // pred_check_branch
          %284 = sbr.rel (%p282) target = $region32
        $region31: #{tpu_custom_call.1} parent=15 // pred_region
          %s285 = sand.u32 %s129, 1
          %s286 = scalar_lea.sflag [#allocation8], %s285
          %s287 = sand.u32 %s129, 1
          %s288 = smul.addr %s287, 4
          %s289 = scalar_lea.vmem [#allocation7], %s288
          %s291 = ssub.s32 64, 64
          %292 = vsyncadd %s286, %s291
          %s293 = sadd.s32 %s29, %s28
          %s294 = smul.addr %s293, 64
          %s295 = scalar_lea.hbm %s3, %s294
          %s297 = sshll.u32 %s289, 4
          %s298 = int_to_ptr.vmem [resolvable:$true] %s297
          %300 = dma.hbm_to_vmem [thread:$0]  %s295, 64, %s298, %s286
        $region32: #{tpu_custom_call.1} parent=15 // pred_fallthru
          _
      $region16: #{tpu_custom_call.1} parent=5 // pred_fallthru
        _
      %p301 = scmp.le.s32.totalorder 1, %s21
      %p302 = scmp.lt.s32.totalorder %s21, 3
      %p303 = pnand %p301, %p302
      %p304 = pneg %p303
      // Predicated region
      $region33: #{tpu_custom_call.1} parent=5 // pred_check
        _
      $region34: #{tpu_custom_call.1} parent=5 // pred_check_branch
        %306 = sbr.rel (%p303) target = $region36
      $region35: #{tpu_custom_call.1} parent=5 // pred_region
        %s307 = ssub.s32 %s21, 1
        %s308 = sand.u32 %s48, 1
        %s309 = scalar_lea.sflag [#allocation3], %s308
        %s310 = sand.u32 %s48, 1
        %s311 = smul.addr %s310, 16
        %s312 = scalar_lea.vmem [#allocation2], %s311
        // Predicated region
        $region37: #{tpu_custom_call.1} parent=35 // pred_check
          %p313 = pneg %p61
        $region38: #{tpu_custom_call.1} parent=35 // pred_check_branch
          %315 = sbr.rel (%p313) target = $region40
        $region39: #{tpu_custom_call.1} parent=35 // pred_region
          %316 = dma.done %s309, 256
        $region40: #{tpu_custom_call.1} parent=35 // pred_fallthru
          _
        %s317 = sand.u32 %s26, 1
        %s318 = scalar_lea.sflag [#allocation5], %s317
        %s319 = sand.u32 %s76, 1
        %s320 = smul.addr %s319, 16
        %s321 = scalar_lea.vmem [#allocation4], %s320
        // Predicated region
        $region41: #{tpu_custom_call.1} parent=35 // pred_check
          %p322 = pneg %p89
        $region42: #{tpu_custom_call.1} parent=35 // pred_check_branch
          %324 = sbr.rel (%p322) target = $region44
        $region43: #{tpu_custom_call.1} parent=35 // pred_region
          %325 = dma.done %s318, 256
        $region44: #{tpu_custom_call.1} parent=35 // pred_fallthru
          _
        %s326 = sand.u32 %s26, 1
        %s327 = scalar_lea.sflag [#allocation5], %s326
        %s328 = sand.u32 %s104, 1
        %s329 = smul.addr %s328, 32
        %s330 = scalar_lea.vmem [#allocation6], %s329
        // Predicated region
        $region45: #{tpu_custom_call.1} parent=35 // pred_check
          %p331 = pneg %p117
        $region46: #{tpu_custom_call.1} parent=35 // pred_check_branch
          %333 = sbr.rel (%p331) target = $region48
        $region47: #{tpu_custom_call.1} parent=35 // pred_region
          %334 = dma.done %s327, 512
        $region48: #{tpu_custom_call.1} parent=35 // pred_fallthru
          _
        %s335 = sand.u32 %s132, 1
        %s336 = scalar_lea.sflag [#allocation8], %s335
        %s337 = sand.u32 %s132, 1
        %s338 = smul.addr %s337, 4
        %s339 = scalar_lea.vmem [#allocation7], %s338
        // Predicated region
        $region49: #{tpu_custom_call.1} parent=35 // pred_check
          %p340 = pneg %p145
        $region50: #{tpu_custom_call.1} parent=35 // pred_check_branch
          %342 = sbr.rel (%p340) target = $region52
        $region51: #{tpu_custom_call.1} parent=35 // pred_region
          %343 = dma.done %s336, 64
        $region52: #{tpu_custom_call.1} parent=35 // pred_fallthru
          _
        %s344 = sand.u32 %s48, 1
        %s345 = scalar_lea.sflag [#allocation3], %s344
        %s346 = sand.u32 %s48, 1
        %s347 = smul.addr %s346, 16
        %s348 = scalar_lea.vmem [#allocation2], %s347
        %p349 = pneg %p61
        %p350 = pneg %p58
        %s351 = sand.u32 %s26, 1
        %s352 = scalar_lea.sflag [#allocation5], %s351
        %s353 = sand.u32 %s76, 1
        %s354 = smul.addr %s353, 16
        %s355 = scalar_lea.vmem [#allocation4], %s354
        %p356 = pneg %p89
        %p357 = pneg %p86
        %s358 = sand.u32 %s26, 1
        %s359 = scalar_lea.sflag [#allocation5], %s358
        %s360 = sand.u32 %s104, 1
        %s361 = smul.addr %s360, 32
        %s362 = scalar_lea.vmem [#allocation6], %s361
        %p363 = pneg %p117
        %p364 = pneg %p114
        %s365 = sand.u32 %s132, 1
        %s366 = scalar_lea.sflag [#allocation8], %s365
        %s367 = sand.u32 %s132, 1
        %s368 = smul.addr %s367, 4
        %s369 = scalar_lea.vmem [#allocation7], %s368
        %p370 = pneg %p145
        %p371 = pneg %p142
        %p372 = pneg %p171
        %p373 = pneg %p168
        %p374 = scmp.lt.s32.totalorder %s30, 1
        %s375 = scalar_select %p374, %s30, 1
        %s376 = smul.addr %s375, 16
        %s377 = scalar_lea.vmem %s4, %s376
        %p378 = pneg %p197
        %p379 = pneg %p194
        %p380 = scmp.lt.s32.totalorder %s30, 1
        %s381 = scalar_select %p380, %s30, 1
        %s382 = smul.addr %s381, 16
        %s383 = scalar_lea.vmem %s5, %s382
        %p384 = scmp.lt.s32.totalorder %s30, 1
        %s385 = scalar_select %p384, %s30, 1
        %s386 = smul.addr %s385, 16
        %s387 = scalar_lea.vmem %s4, %s386
        %p388 = scmp.lt.s32.totalorder %s30, 1
        %s389 = scalar_select %p388, %s30, 1
        %s390 = smul.addr %s389, 16
        %s391 = scalar_lea.vmem %s5, %s390
        %p392 = scmp.eq.s32.totalorder %s31, 0
        // Predicated region
        $region53: #{tpu_custom_call.1} parent=35 // pred_check
          %p393 = pneg %p392
        $region54: #{tpu_custom_call.1} parent=35 // pred_check_branch
          %395 = sbr.rel (%p393) target = $region56
        $region55: #{tpu_custom_call.1} parent=35 // pred_region
          %vm396 = vcmask 0
          %397 = vst.msk [vmem:[%s387] sm:$0x1] %vm396, 0.0
          %398 = vst.msk [vmem:[%s387 + $0x1] sm:$0x1] %vm396, 0.0
          %399 = vst.msk [vmem:[%s387 + $0x2] sm:$0x1] %vm396, 0.0
          %400 = vst.msk [vmem:[%s387 + $0x3] sm:$0x1] %vm396, 0.0
          %401 = vst.msk [vmem:[%s387 + $0x4] sm:$0x1] %vm396, 0.0
          %402 = vst.msk [vmem:[%s387 + $0x5] sm:$0x1] %vm396, 0.0
          %403 = vst.msk [vmem:[%s387 + $0x6] sm:$0x1] %vm396, 0.0
          %404 = vst.msk [vmem:[%s387 + $0x7] sm:$0x1] %vm396, 0.0
          %405 = vst.msk [vmem:[%s387 + $0x8] sm:$0x1] %vm396, 0.0
          %406 = vst.msk [vmem:[%s387 + $0x9] sm:$0x1] %vm396, 0.0
          %407 = vst.msk [vmem:[%s387 + $0xa] sm:$0x1] %vm396, 0.0
          %408 = vst.msk [vmem:[%s387 + $0xb] sm:$0x1] %vm396, 0.0
          %409 = vst.msk [vmem:[%s387 + $0xc] sm:$0x1] %vm396, 0.0
          %410 = vst.msk [vmem:[%s387 + $0xd] sm:$0x1] %vm396, 0.0
          %411 = vst.msk [vmem:[%s387 + $0xe] sm:$0x1] %vm396, 0.0
          %412 = vst.msk [vmem:[%s387 + $0xf] sm:$0x1] %vm396, 0.0
          %413 = vst.msk [vmem:[%s391] sm:$0x1] %vm396, 0.0
          %414 = vst.msk [vmem:[%s391 + $0x1] sm:$0x1] %vm396, 0.0
          %415 = vst.msk [vmem:[%s391 + $0x2] sm:$0x1] %vm396, 0.0
          %416 = vst.msk [vmem:[%s391 + $0x3] sm:$0x1] %vm396, 0.0
          %417 = vst.msk [vmem:[%s391 + $0x4] sm:$0x1] %vm396, 0.0
          %418 = vst.msk [vmem:[%s391 + $0x5] sm:$0x1] %vm396, 0.0
          %419 = vst.msk [vmem:[%s391 + $0x6] sm:$0x1] %vm396, 0.0
          %420 = vst.msk [vmem:[%s391 + $0x7] sm:$0x1] %vm396, 0.0
          %421 = vst.msk [vmem:[%s391 + $0x8] sm:$0x1] %vm396, 0.0
          %422 = vst.msk [vmem:[%s391 + $0x9] sm:$0x1] %vm396, 0.0
          %423 = vst.msk [vmem:[%s391 + $0xa] sm:$0x1] %vm396, 0.0
          %424 = vst.msk [vmem:[%s391 + $0xb] sm:$0x1] %vm396, 0.0
          %425 = vst.msk [vmem:[%s391 + $0xc] sm:$0x1] %vm396, 0.0
          %426 = vst.msk [vmem:[%s391 + $0xd] sm:$0x1] %vm396, 0.0
          %427 = vst.msk [vmem:[%s391 + $0xe] sm:$0x1] %vm396, 0.0
          %428 = vst.msk [vmem:[%s391 + $0xf] sm:$0x1] %vm396, 0.0
        $region56: #{tpu_custom_call.1} parent=35 // pred_fallthru
          _
        %v429 = vld [vmem:[%s312] sm:$0xf]
        %v430 = vld [vmem:[%s312 + $0x4] sm:$0xf]
        %v431 = vld [vmem:[%s312 + $0x8] sm:$0xf]
        %v432 = vld [vmem:[%s312 + $0xc] sm:$0xf]
        %v433 = vld [vmem:[%s321] sm:$0xf]
        %v434 = vld [vmem:[%s321 + $0x4] sm:$0xf]
        %v435 = vld [vmem:[%s321 + $0x8] sm:$0xf]
        %v436 = vld [vmem:[%s321 + $0xc] sm:$0xf]
        %v437 = vld [vmem:[%s330] sm:$0xf]
        %v438 = vld [vmem:[%s330 + $0x4] sm:$0xf]
        %v439 = vld [vmem:[%s330 + $0x8] sm:$0xf]
        %v440 = vld [vmem:[%s330 + $0xc] sm:$0xf]
        %v441 = vld [vmem:[%s330 + $0x10] sm:$0xf]
        %v442 = vld [vmem:[%s330 + $0x14] sm:$0xf]
        %v443 = vld [vmem:[%s330 + $0x18] sm:$0xf]
        %v444 = vld [vmem:[%s330 + $0x1c] sm:$0xf]
        %v445 = vld [vmem:[%s339] sm:$0xf]
        %v446 = vsub.f32 1.0, %v445
        %vm447 = vcmask 1043456
        %v448 = vsel %vm447, %v437, 0.0
        %449 = vadd.xlane.f32.xlu0 %v448
        %v450 = vpop.xlane.xlu0 %449
        %v451 = vsel %vm447, %v438, 0.0
        %452 = vadd.xlane.f32.xlu0 %v451
        %v453 = vpop.xlane.xlu0 %452
        %v454 = vsel %vm447, %v439, 0.0
        %455 = vadd.xlane.f32.xlu0 %v454
        %v456 = vpop.xlane.xlu0 %455
        %v457 = vsel %vm447, %v440, 0.0
        %458 = vadd.xlane.f32.xlu0 %v457
        %v459 = vpop.xlane.xlu0 %458
        %v460 = vsel %vm447, %v441, 0.0
        %461 = vadd.xlane.f32.xlu0 %v460
        %v462 = vpop.xlane.xlu0 %461
        %v463 = vsel %vm447, %v442, 0.0
        %464 = vadd.xlane.f32.xlu0 %v463
        %v465 = vpop.xlane.xlu0 %464
        %v466 = vsel %vm447, %v443, 0.0
        %467 = vadd.xlane.f32.xlu0 %v466
        %v468 = vpop.xlane.xlu0 %467
        %v469 = vsel %vm447, %v444, 0.0
        %470 = vadd.xlane.f32.xlu0 %v469
        %v471 = vpop.xlane.xlu0 %470
        %v472 = vsel %vm447, %v450, 0.0
        %v473 = vrot.slane %v472, 4
        %v474 = vadd.f32 %v472, %v473
        %v475 = vrot.slane %v474, 2
        %v476 = vadd.f32 %v474, %v475
        %v477 = vrot.slane %v476, 1
        %v478 = vadd.f32 %v476, %v477
        %v479 = vsel %vm447, %v453, 0.0
        %v480 = vrot.slane %v479, 4
        %v481 = vadd.f32 %v479, %v480
        %v482 = vrot.slane %v481, 2
        %v483 = vadd.f32 %v481, %v482
        %v484 = vrot.slane %v483, 1
        %v485 = vadd.f32 %v483, %v484
        %v486 = vsel %vm447, %v456, 0.0
        %v487 = vrot.slane %v486, 4
        %v488 = vadd.f32 %v486, %v487
        %v489 = vrot.slane %v488, 2
        %v490 = vadd.f32 %v488, %v489
        %v491 = vrot.slane %v490, 1
        %v492 = vadd.f32 %v490, %v491
        %v493 = vsel %vm447, %v459, 0.0
        %v494 = vrot.slane %v493, 4
        %v495 = vadd.f32 %v493, %v494
        %v496 = vrot.slane %v495, 2
        %v497 = vadd.f32 %v495, %v496
        %v498 = vrot.slane %v497, 1
        %v499 = vadd.f32 %v497, %v498
        %v500 = vsel %vm447, %v462, 0.0
        %v501 = vrot.slane %v500, 4
        %v502 = vadd.f32 %v500, %v501
        %v503 = vrot.slane %v502, 2
        %v504 = vadd.f32 %v502, %v503
        %v505 = vrot.slane %v504, 1
        %v506 = vadd.f32 %v504, %v505
        %v507 = vsel %vm447, %v465, 0.0
        %v508 = vrot.slane %v507, 4
        %v509 = vadd.f32 %v507, %v508
        %v510 = vrot.slane %v509, 2
        %v511 = vadd.f32 %v509, %v510
        %v512 = vrot.slane %v511, 1
        %v513 = vadd.f32 %v511, %v512
        %v514 = vsel %vm447, %v468, 0.0
        %v515 = vrot.slane %v514, 4
        %v516 = vadd.f32 %v514, %v515
        %v517 = vrot.slane %v516, 2
        %v518 = vadd.f32 %v516, %v517
        %v519 = vrot.slane %v518, 1
        %v520 = vadd.f32 %v518, %v519
        %v521 = vsel %vm447, %v471, 0.0
        %v522 = vrot.slane %v521, 4
        %v523 = vadd.f32 %v521, %v522
        %v524 = vrot.slane %v523, 2
        %v525 = vadd.f32 %v523, %v524
        %v526 = vrot.slane %v525, 1
        %v527 = vadd.f32 %v525, %v526
        %v528 = vld [vmem:[%s387] sm:$0x1]
        %v529 = vld [vmem:[%s387 + $0x1] sm:$0x1]
        %v530 = vld [vmem:[%s387 + $0x2] sm:$0x1]
        %v531 = vld [vmem:[%s387 + $0x3] sm:$0x1]
        %v532 = vmul.f32 %v429, %v445
        %v533 = vmul.f32 %v430, %v445
        %v534 = vmul.f32 %v431, %v445
        %v535 = vmul.f32 %v432, %v445
        %v536 = vsel %vm447, %v532, 0.0
        %537 = vadd.xlane.f32.xlu0 %v536
        %v538 = vpop.xlane.xlu0 %537
        %v539 = vsel %vm447, %v533, 0.0
        %540 = vadd.xlane.f32.xlu0 %v539
        %v541 = vpop.xlane.xlu0 %540
        %v542 = vsel %vm447, %v534, 0.0
        %543 = vadd.xlane.f32.xlu0 %v542
        %v544 = vpop.xlane.xlu0 %543
        %v545 = vsel %vm447, %v535, 0.0
        %546 = vadd.xlane.f32.xlu0 %v545
        %v547 = vpop.xlane.xlu0 %546
        %v548 = vsel %vm447, %v538, 0.0
        %v549 = vrot.slane %v548, 4
        %v550 = vadd.f32 %v548, %v549
        %v551 = vrot.slane %v550, 2
        %v552 = vadd.f32 %v550, %v551
        %v553 = vrot.slane %v552, 1
        %v554 = vadd.f32 %v552, %v553
        %v555 = vsel %vm447, %v541, 0.0
        %v556 = vrot.slane %v555, 4
        %v557 = vadd.f32 %v555, %v556
        %v558 = vrot.slane %v557, 2
        %v559 = vadd.f32 %v557, %v558
        %v560 = vrot.slane %v559, 1
        %v561 = vadd.f32 %v559, %v560
        %v562 = vsel %vm447, %v544, 0.0
        %v563 = vrot.slane %v562, 4
        %v564 = vadd.f32 %v562, %v563
        %v565 = vrot.slane %v564, 2
        %v566 = vadd.f32 %v564, %v565
        %v567 = vrot.slane %v566, 1
        %v568 = vadd.f32 %v566, %v567
        %v569 = vsel %vm447, %v547, 0.0
        %v570 = vrot.slane %v569, 4
        %v571 = vadd.f32 %v569, %v570
        %v572 = vrot.slane %v571, 2
        %v573 = vadd.f32 %v571, %v572
        %v574 = vrot.slane %v573, 1
        %v575 = vadd.f32 %v573, %v574
        %v576 = vadd.f32 %v528, %v554
        %v577 = vadd.f32 %v529, %v561
        %v578 = vadd.f32 %v530, %v568
        %v579 = vadd.f32 %v531, %v575
        %vm580 = vcmask 0
        %581 = vst.msk [vmem:[%s387] sm:$0x1] %vm580, %v576
        %582 = vst.msk [vmem:[%s387 + $0x1] sm:$0x1] %vm580, %v577
        %583 = vst.msk [vmem:[%s387 + $0x2] sm:$0x1] %vm580, %v578
        %584 = vst.msk [vmem:[%s387 + $0x3] sm:$0x1] %vm580, %v579
        %s585 = scalar_lea.vmem %s387, 4
        %v586 = vld [vmem:[%s585] sm:$0x1]
        %v587 = vld [vmem:[%s585 + $0x1] sm:$0x1]
        %v588 = vld [vmem:[%s585 + $0x2] sm:$0x1]
        %v589 = vld [vmem:[%s585 + $0x3] sm:$0x1]
        %v590 = vmul.f32 %v433, %v445
        %v591 = vmul.f32 %v434, %v445
        %v592 = vmul.f32 %v435, %v445
        %v593 = vmul.f32 %v436, %v445
        %v594 = vsel %vm447, %v590, 0.0
        %595 = vadd.xlane.f32.xlu0 %v594
        %v596 = vpop.xlane.xlu0 %595
        %v597 = vsel %vm447, %v591, 0.0
        %598 = vadd.xlane.f32.xlu0 %v597
        %v599 = vpop.xlane.xlu0 %598
        %v600 = vsel %vm447, %v592, 0.0
        %601 = vadd.xlane.f32.xlu0 %v600
        %v602 = vpop.xlane.xlu0 %601
        %v603 = vsel %vm447, %v593, 0.0
        %604 = vadd.xlane.f32.xlu0 %v603
        %v605 = vpop.xlane.xlu0 %604
        %v606 = vsel %vm447, %v596, 0.0
        %v607 = vrot.slane %v606, 4
        %v608 = vadd.f32 %v606, %v607
        %v609 = vrot.slane %v608, 2
        %v610 = vadd.f32 %v608, %v609
        %v611 = vrot.slane %v610, 1
        %v612 = vadd.f32 %v610, %v611
        %v613 = vsel %vm447, %v599, 0.0
        %v614 = vrot.slane %v613, 4
        %v615 = vadd.f32 %v613, %v614
        %v616 = vrot.slane %v615, 2
        %v617 = vadd.f32 %v615, %v616
        %v618 = vrot.slane %v617, 1
        %v619 = vadd.f32 %v617, %v618
        %v620 = vsel %vm447, %v602, 0.0
        %v621 = vrot.slane %v620, 4
        %v622 = vadd.f32 %v620, %v621
        %v623 = vrot.slane %v622, 2
        %v624 = vadd.f32 %v622, %v623
        %v625 = vrot.slane %v624, 1
        %v626 = vadd.f32 %v624, %v625
        %v627 = vsel %vm447, %v605, 0.0
        %v628 = vrot.slane %v627, 4
        %v629 = vadd.f32 %v627, %v628
        %v630 = vrot.slane %v629, 2
        %v631 = vadd.f32 %v629, %v630
        %v632 = vrot.slane %v631, 1
        %v633 = vadd.f32 %v631, %v632
        %v634 = vadd.f32 %v586, %v612
        %v635 = vadd.f32 %v587, %v619
        %v636 = vadd.f32 %v588, %v626
        %v637 = vadd.f32 %v589, %v633
        %638 = vst.msk [vmem:[%s585] sm:$0x1] %vm580, %v634
        %639 = vst.msk [vmem:[%s585 + $0x1] sm:$0x1] %vm580, %v635
        %640 = vst.msk [vmem:[%s585 + $0x2] sm:$0x1] %vm580, %v636
        %641 = vst.msk [vmem:[%s585 + $0x3] sm:$0x1] %vm580, %v637
        %s642 = scalar_lea.vmem %s387, 8
        %v643 = vld [vmem:[%s642] sm:$0x1]
        %v644 = vld [vmem:[%s642 + $0x1] sm:$0x1]
        %v645 = vld [vmem:[%s642 + $0x2] sm:$0x1]
        %v646 = vld [vmem:[%s642 + $0x3] sm:$0x1]
        %v647 = vld [vmem:[%s642 + $0x4] sm:$0x1]
        %v648 = vld [vmem:[%s642 + $0x5] sm:$0x1]
        %v649 = vld [vmem:[%s642 + $0x6] sm:$0x1]
        %v650 = vld [vmem:[%s642 + $0x7] sm:$0x1]
        %v651 = vadd.f32 %v643, %v478
        %v652 = vadd.f32 %v644, %v485
        %v653 = vadd.f32 %v645, %v492
        %v654 = vadd.f32 %v646, %v499
        %v655 = vadd.f32 %v647, %v506
        %v656 = vadd.f32 %v648, %v513
        %v657 = vadd.f32 %v649, %v520
        %v658 = vadd.f32 %v650, %v527
        %659 = vst.msk [vmem:[%s642] sm:$0x1] %vm580, %v651
        %660 = vst.msk [vmem:[%s642 + $0x1] sm:$0x1] %vm580, %v652
        %661 = vst.msk [vmem:[%s642 + $0x2] sm:$0x1] %vm580, %v653
        %662 = vst.msk [vmem:[%s642 + $0x3] sm:$0x1] %vm580, %v654
        %663 = vst.msk [vmem:[%s642 + $0x4] sm:$0x1] %vm580, %v655
        %664 = vst.msk [vmem:[%s642 + $0x5] sm:$0x1] %vm580, %v656
        %665 = vst.msk [vmem:[%s642 + $0x6] sm:$0x1] %vm580, %v657
        %666 = vst.msk [vmem:[%s642 + $0x7] sm:$0x1] %vm580, %v658
        %v667 = vld [vmem:[%s391] sm:$0x1]
        %v668 = vld [vmem:[%s391 + $0x1] sm:$0x1]
        %v669 = vld [vmem:[%s391 + $0x2] sm:$0x1]
        %v670 = vld [vmem:[%s391 + $0x3] sm:$0x1]
        %v671 = vmul.f32 %v429, %v446
        %v672 = vmul.f32 %v430, %v446
        %v673 = vmul.f32 %v431, %v446
        %v674 = vmul.f32 %v432, %v446
        %v675 = vsel %vm447, %v671, 0.0
        %676 = vadd.xlane.f32.xlu0 %v675
        %v677 = vpop.xlane.xlu0 %676
        %v678 = vsel %vm447, %v672, 0.0
        %679 = vadd.xlane.f32.xlu0 %v678
        %v680 = vpop.xlane.xlu0 %679
        %v681 = vsel %vm447, %v673, 0.0
        %682 = vadd.xlane.f32.xlu0 %v681
        %v683 = vpop.xlane.xlu0 %682
        %v684 = vsel %vm447, %v674, 0.0
        %685 = vadd.xlane.f32.xlu0 %v684
        %v686 = vpop.xlane.xlu0 %685
        %v687 = vsel %vm447, %v677, 0.0
        %v688 = vrot.slane %v687, 4
        %v689 = vadd.f32 %v687, %v688
        %v690 = vrot.slane %v689, 2
        %v691 = vadd.f32 %v689, %v690
        %v692 = vrot.slane %v691, 1
        %v693 = vadd.f32 %v691, %v692
        %v694 = vsel %vm447, %v680, 0.0
        %v695 = vrot.slane %v694, 4
        %v696 = vadd.f32 %v694, %v695
        %v697 = vrot.slane %v696, 2
        %v698 = vadd.f32 %v696, %v697
        %v699 = vrot.slane %v698, 1
        %v700 = vadd.f32 %v698, %v699
        %v701 = vsel %vm447, %v683, 0.0
        %v702 = vrot.slane %v701, 4
        %v703 = vadd.f32 %v701, %v702
        %v704 = vrot.slane %v703, 2
        %v705 = vadd.f32 %v703, %v704
        %v706 = vrot.slane %v705, 1
        %v707 = vadd.f32 %v705, %v706
        %v708 = vsel %vm447, %v686, 0.0
        %v709 = vrot.slane %v708, 4
        %v710 = vadd.f32 %v708, %v709
        %v711 = vrot.slane %v710, 2
        %v712 = vadd.f32 %v710, %v711
        %v713 = vrot.slane %v712, 1
        %v714 = vadd.f32 %v712, %v713
        %v715 = vadd.f32 %v667, %v693
        %v716 = vadd.f32 %v668, %v700
        %v717 = vadd.f32 %v669, %v707
        %v718 = vadd.f32 %v670, %v714
        %719 = vst.msk [vmem:[%s391] sm:$0x1] %vm580, %v715
        %720 = vst.msk [vmem:[%s391 + $0x1] sm:$0x1] %vm580, %v716
        %721 = vst.msk [vmem:[%s391 + $0x2] sm:$0x1] %vm580, %v717
        %722 = vst.msk [vmem:[%s391 + $0x3] sm:$0x1] %vm580, %v718
        %s723 = scalar_lea.vmem %s391, 4
        %v724 = vld [vmem:[%s723] sm:$0x1]
        %v725 = vld [vmem:[%s723 + $0x1] sm:$0x1]
        %v726 = vld [vmem:[%s723 + $0x2] sm:$0x1]
        %v727 = vld [vmem:[%s723 + $0x3] sm:$0x1]
        %v728 = vmul.f32 %v433, %v446
        %v729 = vmul.f32 %v434, %v446
        %v730 = vmul.f32 %v435, %v446
        %v731 = vmul.f32 %v436, %v446
        %v732 = vsel %vm447, %v728, 0.0
        %733 = vadd.xlane.f32.xlu0 %v732
        %v734 = vpop.xlane.xlu0 %733
        %v735 = vsel %vm447, %v729, 0.0
        %736 = vadd.xlane.f32.xlu0 %v735
        %v737 = vpop.xlane.xlu0 %736
        %v738 = vsel %vm447, %v730, 0.0
        %739 = vadd.xlane.f32.xlu0 %v738
        %v740 = vpop.xlane.xlu0 %739
        %v741 = vsel %vm447, %v731, 0.0
        %742 = vadd.xlane.f32.xlu0 %v741
        %v743 = vpop.xlane.xlu0 %742
        %v744 = vsel %vm447, %v734, 0.0
        %v745 = vrot.slane %v744, 4
        %v746 = vadd.f32 %v744, %v745
        %v747 = vrot.slane %v746, 2
        %v748 = vadd.f32 %v746, %v747
        %v749 = vrot.slane %v748, 1
        %v750 = vadd.f32 %v748, %v749
        %v751 = vsel %vm447, %v737, 0.0
        %v752 = vrot.slane %v751, 4
        %v753 = vadd.f32 %v751, %v752
        %v754 = vrot.slane %v753, 2
        %v755 = vadd.f32 %v753, %v754
        %v756 = vrot.slane %v755, 1
        %v757 = vadd.f32 %v755, %v756
        %v758 = vsel %vm447, %v740, 0.0
        %v759 = vrot.slane %v758, 4
        %v760 = vadd.f32 %v758, %v759
        %v761 = vrot.slane %v760, 2
        %v762 = vadd.f32 %v760, %v761
        %v763 = vrot.slane %v762, 1
        %v764 = vadd.f32 %v762, %v763
        %v765 = vsel %vm447, %v743, 0.0
        %v766 = vrot.slane %v765, 4
        %v767 = vadd.f32 %v765, %v766
        %v768 = vrot.slane %v767, 2
        %v769 = vadd.f32 %v767, %v768
        %v770 = vrot.slane %v769, 1
        %v771 = vadd.f32 %v769, %v770
        %v772 = vadd.f32 %v724, %v750
        %v773 = vadd.f32 %v725, %v757
        %v774 = vadd.f32 %v726, %v764
        %v775 = vadd.f32 %v727, %v771
        %776 = vst.msk [vmem:[%s723] sm:$0x1] %vm580, %v772
        %777 = vst.msk [vmem:[%s723 + $0x1] sm:$0x1] %vm580, %v773
        %778 = vst.msk [vmem:[%s723 + $0x2] sm:$0x1] %vm580, %v774
        %779 = vst.msk [vmem:[%s723 + $0x3] sm:$0x1] %vm580, %v775
        %s780 = scalar_lea.vmem %s391, 8
        %v781 = vld [vmem:[%s780] sm:$0x1]
        %v782 = vld [vmem:[%s780 + $0x1] sm:$0x1]
        %v783 = vld [vmem:[%s780 + $0x2] sm:$0x1]
        %v784 = vld [vmem:[%s780 + $0x3] sm:$0x1]
        %v785 = vld [vmem:[%s780 + $0x4] sm:$0x1]
        %v786 = vld [vmem:[%s780 + $0x5] sm:$0x1]
        %v787 = vld [vmem:[%s780 + $0x6] sm:$0x1]
        %v788 = vld [vmem:[%s780 + $0x7] sm:$0x1]
        %v789 = vadd.f32 %v781, %v478
        %v790 = vadd.f32 %v782, %v485
        %v791 = vadd.f32 %v783, %v492
        %v792 = vadd.f32 %v784, %v499
        %v793 = vadd.f32 %v785, %v506
        %v794 = vadd.f32 %v786, %v513
        %v795 = vadd.f32 %v787, %v520
        %v796 = vadd.f32 %v788, %v527
        %797 = vst.msk [vmem:[%s780] sm:$0x1] %vm580, %v789
        %798 = vst.msk [vmem:[%s780 + $0x1] sm:$0x1] %vm580, %v790
        %799 = vst.msk [vmem:[%s780 + $0x2] sm:$0x1] %vm580, %v791
        %800 = vst.msk [vmem:[%s780 + $0x3] sm:$0x1] %vm580, %v792
        %801 = vst.msk [vmem:[%s780 + $0x4] sm:$0x1] %vm580, %v793
        %802 = vst.msk [vmem:[%s780 + $0x5] sm:$0x1] %vm580, %v794
        %803 = vst.msk [vmem:[%s780 + $0x6] sm:$0x1] %vm580, %v795
        %804 = vst.msk [vmem:[%s780 + $0x7] sm:$0x1] %vm580, %v796
        // Predicated region
        $region57: #{tpu_custom_call.1} parent=35 // pred_check
          %p805 = pneg %p392
        $region58: #{tpu_custom_call.1} parent=35 // pred_check_branch
          %807 = sbr.rel (%p805) target = $region60
        $region59: #{tpu_custom_call.1} parent=35 // pred_region
          %v808 = vld [vmem:[%s387] sm:$0x1]
          %v809 = vld [vmem:[%s387 + $0x1] sm:$0x1]
          %v810 = vld [vmem:[%s387 + $0x2] sm:$0x1]
          %v811 = vld [vmem:[%s387 + $0x3] sm:$0x1]
          %v812 = vld [vmem:[%s387 + $0x4] sm:$0x1]
          %v813 = vld [vmem:[%s387 + $0x5] sm:$0x1]
          %v814 = vld [vmem:[%s387 + $0x6] sm:$0x1]
          %v815 = vld [vmem:[%s387 + $0x7] sm:$0x1]
          %v816 = vld [vmem:[%s387 + $0x8] sm:$0x1]
          %v817 = vld [vmem:[%s387 + $0x9] sm:$0x1]
          %v818 = vld [vmem:[%s387 + $0xa] sm:$0x1]
          %v819 = vld [vmem:[%s387 + $0xb] sm:$0x1]
          %v820 = vld [vmem:[%s387 + $0xc] sm:$0x1]
          %v821 = vld [vmem:[%s387 + $0xd] sm:$0x1]
          %v822 = vld [vmem:[%s387 + $0xe] sm:$0x1]
          %v823 = vld [vmem:[%s387 + $0xf] sm:$0x1]
          %v824 = vmul.f32 %v808, 0.001953125
          %v825 = vmul.f32 %v809, 0.001953125
          %v826 = vmul.f32 %v810, 0.001953125
          %v827 = vmul.f32 %v811, 0.001953125
          %v828 = vmul.f32 %v812, 0.001953125
          %v829 = vmul.f32 %v813, 0.001953125
          %v830 = vmul.f32 %v814, 0.001953125
          %v831 = vmul.f32 %v815, 0.001953125
          %v832 = vmul.f32 %v816, 0.001953125
          %v833 = vmul.f32 %v817, 0.001953125
          %v834 = vmul.f32 %v818, 0.001953125
          %v835 = vmul.f32 %v819, 0.001953125
          %v836 = vmul.f32 %v820, 0.001953125
          %v837 = vmul.f32 %v821, 0.001953125
          %v838 = vmul.f32 %v822, 0.001953125
          %v839 = vmul.f32 %v823, 0.001953125
          %840 = vst.msk [vmem:[%s387] sm:$0x1] %vm580, %v824
          %841 = vst.msk [vmem:[%s387 + $0x1] sm:$0x1] %vm580, %v825
          %842 = vst.msk [vmem:[%s387 + $0x2] sm:$0x1] %vm580, %v826
          %843 = vst.msk [vmem:[%s387 + $0x3] sm:$0x1] %vm580, %v827
          %844 = vst.msk [vmem:[%s387 + $0x4] sm:$0x1] %vm580, %v828
          %845 = vst.msk [vmem:[%s387 + $0x5] sm:$0x1] %vm580, %v829
          %846 = vst.msk [vmem:[%s387 + $0x6] sm:$0x1] %vm580, %v830
          %847 = vst.msk [vmem:[%s387 + $0x7] sm:$0x1] %vm580, %v831
          %848 = vst.msk [vmem:[%s387 + $0x8] sm:$0x1] %vm580, %v832
          %849 = vst.msk [vmem:[%s387 + $0x9] sm:$0x1] %vm580, %v833
          %850 = vst.msk [vmem:[%s387 + $0xa] sm:$0x1] %vm580, %v834
          %851 = vst.msk [vmem:[%s387 + $0xb] sm:$0x1] %vm580, %v835
          %852 = vst.msk [vmem:[%s387 + $0xc] sm:$0x1] %vm580, %v836
          %853 = vst.msk [vmem:[%s387 + $0xd] sm:$0x1] %vm580, %v837
          %854 = vst.msk [vmem:[%s387 + $0xe] sm:$0x1] %vm580, %v838
          %855 = vst.msk [vmem:[%s387 + $0xf] sm:$0x1] %vm580, %v839
          %v856 = vld [vmem:[%s391] sm:$0x1]
          %v857 = vld [vmem:[%s391 + $0x1] sm:$0x1]
          %v858 = vld [vmem:[%s391 + $0x2] sm:$0x1]
          %v859 = vld [vmem:[%s391 + $0x3] sm:$0x1]
          %v860 = vld [vmem:[%s391 + $0x4] sm:$0x1]
          %v861 = vld [vmem:[%s391 + $0x5] sm:$0x1]
          %v862 = vld [vmem:[%s391 + $0x6] sm:$0x1]
          %v863 = vld [vmem:[%s391 + $0x7] sm:$0x1]
          %v864 = vld [vmem:[%s391 + $0x8] sm:$0x1]
          %v865 = vld [vmem:[%s391 + $0x9] sm:$0x1]
          %v866 = vld [vmem:[%s391 + $0xa] sm:$0x1]
          %v867 = vld [vmem:[%s391 + $0xb] sm:$0x1]
          %v868 = vld [vmem:[%s391 + $0xc] sm:$0x1]
          %v869 = vld [vmem:[%s391 + $0xd] sm:$0x1]
          %v870 = vld [vmem:[%s391 + $0xe] sm:$0x1]
          %v871 = vld [vmem:[%s391 + $0xf] sm:$0x1]
          %v872 = vmul.f32 %v856, 0.001953125
          %v873 = vmul.f32 %v857, 0.001953125
          %v874 = vmul.f32 %v858, 0.001953125
          %v875 = vmul.f32 %v859, 0.001953125
          %v876 = vmul.f32 %v860, 0.001953125
          %v877 = vmul.f32 %v861, 0.001953125
          %v878 = vmul.f32 %v862, 0.001953125
          %v879 = vmul.f32 %v863, 0.001953125
          %v880 = vmul.f32 %v864, 0.001953125
          %v881 = vmul.f32 %v865, 0.001953125
          %v882 = vmul.f32 %v866, 0.001953125
          %v883 = vmul.f32 %v867, 0.001953125
          %v884 = vmul.f32 %v868, 0.001953125
          %v885 = vmul.f32 %v869, 0.001953125
          %v886 = vmul.f32 %v870, 0.001953125
          %v887 = vmul.f32 %v871, 0.001953125
          %888 = vst.msk [vmem:[%s391] sm:$0x1] %vm580, %v872
          %889 = vst.msk [vmem:[%s391 + $0x1] sm:$0x1] %vm580, %v873
          %890 = vst.msk [vmem:[%s391 + $0x2] sm:$0x1] %vm580, %v874
          %891 = vst.msk [vmem:[%s391 + $0x3] sm:$0x1] %vm580, %v875
          %892 = vst.msk [vmem:[%s391 + $0x4] sm:$0x1] %vm580, %v876
          %893 = vst.msk [vmem:[%s391 + $0x5] sm:$0x1] %vm580, %v877
          %894 = vst.msk [vmem:[%s391 + $0x6] sm:$0x1] %vm580, %v878
          %895 = vst.msk [vmem:[%s391 + $0x7] sm:$0x1] %vm580, %v879
          %896 = vst.msk [vmem:[%s391 + $0x8] sm:$0x1] %vm580, %v880
          %897 = vst.msk [vmem:[%s391 + $0x9] sm:$0x1] %vm580, %v881
          %898 = vst.msk [vmem:[%s391 + $0xa] sm:$0x1] %vm580, %v882
          %899 = vst.msk [vmem:[%s391 + $0xb] sm:$0x1] %vm580, %v883
          %900 = vst.msk [vmem:[%s391 + $0xc] sm:$0x1] %vm580, %v884
          %901 = vst.msk [vmem:[%s391 + $0xd] sm:$0x1] %vm580, %v885
          %902 = vst.msk [vmem:[%s391 + $0xe] sm:$0x1] %vm580, %v886
          %903 = vst.msk [vmem:[%s391 + $0xf] sm:$0x1] %vm580, %v887
        $region60: #{tpu_custom_call.1} parent=35 // pred_fallthru
          _
        %p904 = scmp.lt.s32.totalorder %s30, 1
        %s905 = scalar_select %p904, %s30, 1
        %s906 = smul.addr %s905, 16
        %s907 = scalar_lea.vmem %s4, %s906
        %p908 = scmp.lt.s32.totalorder %s30, 1
        %s909 = scalar_select %p908, %s30, 1
        %s910 = smul.addr %s909, 16
        %s911 = scalar_lea.vmem %s5, %s910
        // Predicated region
        $region61: #{tpu_custom_call.1} parent=35 // pred_check
          %p912 = pneg %p168
        $region62: #{tpu_custom_call.1} parent=35 // pred_check_branch
          %914 = sbr.rel (%p912) target = $region64
        $region63: #{tpu_custom_call.1} parent=35 // pred_region
          _
        $region64: #{tpu_custom_call.1} parent=35 // pred_fallthru
          _
        // Predicated region
        $region65: #{tpu_custom_call.1} parent=35 // pred_check
          %p915 = pneg %p194
        $region66: #{tpu_custom_call.1} parent=35 // pred_check_branch
          %917 = sbr.rel (%p915) target = $region68
        $region67: #{tpu_custom_call.1} parent=35 // pred_region
          _
        $region68: #{tpu_custom_call.1} parent=35 // pred_fallthru
          _
      $region36: #{tpu_custom_call.1} parent=5 // pred_fallthru
        _
      %p918 = scmp.le.s32.totalorder 2, %s21
      // Predicated region
      $region69: #{tpu_custom_call.1} parent=5 // pred_check
        %p919 = pneg %p918
      $region70: #{tpu_custom_call.1} parent=5 // pred_check_branch
        %921 = sbr.rel (%p919) target = $region72
      $region71: #{tpu_custom_call.1} parent=5 // pred_region
        %s922 = ssub.s32 %s21, 2
        // Predicated region
        $region73: #{tpu_custom_call.1} parent=71 // pred_check
          %p923 = pneg %p174
        $region74: #{tpu_custom_call.1} parent=71 // pred_check_branch
          %925 = sbr.rel (%p923) target = $region76
        $region75: #{tpu_custom_call.1} parent=71 // pred_region
          %p926 = scmp.lt.s32.totalorder %s32, 1
          %s927 = scalar_select %p926, %s32, 1
          %s928 = smul.addr %s927, 16
          %s929 = scalar_lea.vmem %s4, %s928
        $region76: #{tpu_custom_call.1} parent=71 // pred_fallthru
          _
        // Predicated region
        $region77: #{tpu_custom_call.1} parent=71 // pred_check
          %p930 = pneg %p200
        $region78: #{tpu_custom_call.1} parent=71 // pred_check_branch
          %932 = sbr.rel (%p930) target = $region80
        $region79: #{tpu_custom_call.1} parent=71 // pred_region
          %p933 = scmp.lt.s32.totalorder %s32, 1
          %s934 = scalar_select %p933, %s32, 1
          %s935 = smul.addr %s934, 16
          %s936 = scalar_lea.vmem %s5, %s935
        $region80: #{tpu_custom_call.1} parent=71 // pred_fallthru
          _
      $region72: #{tpu_custom_call.1} parent=5 // pred_fallthru
        _
    $region6: #{tpu_custom_call.1} parent=1 // loop_footer
      %s25 = sadd.s32 1, %s21
    $region7: #{tpu_custom_call.1} parent=1 // loop_footer_branch
      %20 = sbr.rel target = $region3
    $region8: #{tpu_custom_call.1} parent=1 // loop_exit
      _
    %937 = vsyncpa [#allocation3], 1
    %s938 = scalar_lea.sflag [#allocation3], 1
    %939 = vsyncpa %s938, 1
    %940 = vsyncpa [#allocation5], 1
    %s941 = scalar_lea.sflag [#allocation5], 1
    %942 = vsyncpa %s941, 1
    %943 = vsyncpa [#allocation8], 1
    %s944 = scalar_lea.sflag [#allocation8], 1
    %945 = vsyncpa %s944, 1

</llo_original>
